<compile_context>
chip_gen: v7x
topology: tpu7x:2x2x1
jax: 0.10.0
libtpu: 0.0.40
codegen_flags: <defaults>
</compile_context>

<pallas_src>
import numpy as np
import jax
import jax.numpy as jnp
from jax.experimental import pallas as pl
from jax.experimental.pallas import tpu as pltpu


# ----------------------------- Pallas kernel -------------------------------

def make_nsc_kernel(D, l0, l1, l2, k, hs, risks):
    khs = k * hs
    kout = k + risks * k

    def nsc_kernel(xt_ref, pw0_ref, pw1_ref, pw2_ref, wcomb_ref, vecs_ref,
                   out_ref):
        xt = xt_ref[...]                      # (TN, D+1)  last col = tau
        tau = xt[:, D:D + 1]                  # (TN, 1)

        # consolidated resident row vectors
        b0 = vecs_ref[0:1, 0:l0]
        b1 = vecs_ref[1:2, 0:l1]
        b2 = vecs_ref[2:3, 0:l2]
        const = vecs_ref[3:4, 0:khs]          # latents @ W1[:rep] + ob0, flat
        wtau = vecs_ref[4:5, 0:khs]           # tau row of squared W1, flat
        bcomb = vecs_ref[5:6, 0:kout]         # [pb3 | ob1 risks-major]

        # ---- profile MLP: (Linear -> ReLU6) x3   (tau column hits a zero row)
        h = jnp.clip(jnp.dot(xt, pw0_ref[...],
                             preferred_element_type=jnp.float32) + b0, 0.0, 6.0)
        h = jnp.clip(jnp.dot(h, pw1_ref[...],
                             preferred_element_type=jnp.float32) + b1, 0.0, 6.0)
        h = jnp.clip(jnp.dot(h, pw2_ref[...],
                             preferred_element_type=jnp.float32) + b2, 0.0, 6.0)

        # ---- k outcome nets, vectorized lane-dense over (TN, k*hs)
        pre = const + tau * wtau              # (TN, k*hs)
        h1 = jnp.tanh(pre)                    # (TN, k*hs)

        # ---- one combined matmul: [h | h1] @ [[pw3, 0], [0, wbd]] + bcomb
        hcat = jnp.concatenate([h, h1], axis=1)            # (TN, l2 + k*hs)
        out_all = jnp.dot(hcat, wcomb_ref[...],
                          preferred_element_type=jnp.float32) + bcomb

        # profile logits -> log_softmax (max-stabilized)
        logits = out_all[:, :k]
        m = jnp.max(logits, axis=1, keepdims=True)
        la = logits - m - jnp.log(
            jnp.sum(jnp.exp(logits - m), axis=1, keepdims=True))

        # outcome: softplus, scale by -tau  (columns already risks-major)
        sr = -(tau * jax.nn.softplus(out_all[:, k:]))

        out_ref[...] = jnp.concatenate([la, sr], axis=1)   # (TN, k + risks*k)

    return nsc_kernel


# ------------------------------ wrapper -------------------------------------

def _round_up(v, m):
    return ((v + m - 1) // m) * m


def nsc_forward(x, horizon, params, *, tile_n=4096):
    N, D = x.shape
    k, rep = params["latents"].shape
    risks = params["competing"].shape[1]
    hs = params["olw0"].shape[2]
    l0 = params["pw0"].shape[1]
    l1 = params["pw1"].shape[1]
    l2 = params["pw2"].shape[1]
    khs = k * hs
    kout = k + risks * k
    f32 = jnp.float32

    x = x.astype(f32)
    tau = horizon.reshape(N, 1).astype(f32)
    xt = jnp.concatenate([x, tau], axis=1)                   # (N, D+1)

    # ---------- batch-invariant parameter math (hoisted) ---------------------
    w1sq = params["olw0"].astype(f32) ** 2                   # (k, rep+1, hs)
    const = (jnp.sum(params["latents"].astype(f32)[:, :, None]
                     * w1sq[:, :rep, :], axis=1)
             + params["ob0"].astype(f32))                    # (k, hs)
    w_tau = w1sq[:, rep, :]                                  # (k, hs)
    w2sq = params["olw1"].astype(f32) ** 2                   # (k, hs, risks)

    # block-diagonal outcome layer with risks-major columns:
    #   wbd[j*hs + h, r*k + j] = w2sq[j, h, r]
    eye_k = jnp.eye(k, dtype=f32)
    wbd = (w2sq[:, :, :, None] * eye_k[:, None, None, :]).reshape(khs, risks * k)

    # profile weights (tau column of xt hits a zero row in pw0e)
    pw0e = jnp.concatenate([params["pw0"].astype(f32),
                            jnp.zeros((1, l0), f32)], axis=0)  # (D+1, l0)
    pw1 = params["pw1"].astype(f32)
    pw2 = params["pw2"].astype(f32)
    pw3 = params["pw3"].astype(f32)                            # (l2, k)

    # combined RHS: [[pw3, 0], [0, wbd]]  ->  (l2 + k*hs, k + risks*k)
    wcomb = jnp.zeros((l2 + khs, kout), f32)
    wcomb = wcomb.at[:l2, :k].set(pw3)
    wcomb = wcomb.at[l2:, k:].set(wbd)

    ob1 = params["ob1"].astype(f32)                            # (k, risks)
    bcomb = jnp.concatenate([params["pb3"].astype(f32).reshape(1, k),
                             ob1.T.reshape(1, risks * k)], axis=1)  # (1, kout)

    # consolidated resident row-vector slab (8 rows, lane-padded once)
    rows = [params["pb0"].astype(f32).reshape(-1),
            params["pb1"].astype(f32).reshape(-1),
            params["pb2"].astype(f32).reshape(-1),
            const.reshape(-1),
            w_tau.reshape(-1),
            bcomb.reshape(-1)]
    maxw = max(int(r.shape[0]) for r in rows)
    vecs = jnp.zeros((8, maxw), f32)
    for i, r in enumerate(rows):
        vecs = vecs.at[i, :r.shape[0]].set(r)

    # log_beta is batch-invariant: compute once here.
    lb = jax.nn.log_softmax(params["competing"].astype(f32), axis=1)  # (k, risks)
    # TODO(synk): dense broadcast is pure torch-API glue; downstream code could
    # consume the (k, risks) log-softmax directly and skip this HBM write.
    log_beta = jnp.broadcast_to(lb.T[None, :, :], (N, risks, k))

    # ---------- batch tiling (no padding copy; partial last block allowed) ---
    tn = min(int(tile_n), _round_up(N, 8))
    if N >= 1024:
        # guarantee >= 2 grid steps so v7x's two TensorCores both get work
        tn = min(tn, _round_up(pl.cdiv(N, 2), 8))
    tn = max(8, (tn // 8) * 8)
    grid = (pl.cdiv(N, tn),)

    # VMEM budget from tile arithmetic: every (tn, <=128)-wide f32 buffer costs
    # tn*512 B; ~2 in + 2 out pipeline buffers + ~8 live temporaries.
    lane_bytes = 512
    live_rows = 2 + 2 + 8
    vmem_limit = int(min(64 * 1024 * 1024,
                         max(32 * 1024 * 1024,
                             tn * lane_bytes * live_rows + (4 << 20))))

    def row_spec(ncols):
        return pl.BlockSpec((tn, ncols), lambda i: (i, 0))

    def resident(arr):
        zeros = (0,) * arr.ndim
        return pl.BlockSpec(arr.shape, lambda i, _z=zeros: _z)

    weights = (pw0e, pw1, pw2, wcomb, vecs)
    kernel = make_nsc_kernel(D, l0, l1, l2, k, hs, risks)

    out_slab = pl.pallas_call(
        kernel,
        grid=grid,
        in_specs=[row_spec(D + 1)] + [resident(w) for w in weights],
        out_specs=row_spec(kout),
        out_shape=jax.ShapeDtypeStruct((N, kout), f32),
        compiler_params=pltpu.CompilerParams(
            dimension_semantics=("parallel",),
            vmem_limit_bytes=vmem_limit),
    )(xt, *weights)

    log_alphas = out_slab[:, :k].reshape(N, 1, k)
    if k == 1:  # torch special-cases k == 1 with a zero log_alphas tensor
        log_alphas = jnp.zeros((N, 1, 1), f32)
    log_sr = out_slab[:, k:].reshape(N, risks, k)   # risks-major -> no transpose

    # tau_outcome: torch returns k detached copies of horizon.unsqueeze(1) (glue)
    tau_outcome = [tau for _ in range(k)]
    return log_alphas, log_beta, log_sr, tau_outcome


# ------------------------- pure-JAX reference --------------------------------

def nsc_reference(x, horizon, p):
    N = x.shape[0]
    k, rep = p["latents"].shape
    risks = p["competing"].shape[1]
    tau = horizon.reshape(N, 1)

    h = jnp.clip(x @ p["pw0"] + p["pb0"], 0.0, 6.0)
    h = jnp.clip(h @ p["pw1"] + p["pb1"], 0.0, 6.0)
    h = jnp.clip(h @ p["pw2"] + p["pb2"], 0.0, 6.0)
    logits = h @ p["pw3"] + p["pb3"]
    log_alphas = jax.nn.log_softmax(logits, axis=1).reshape(N, 1, k)

    sr, beta = [], []
    for i in range(k):
        lat = jnp.broadcast_to(p["latents"][i][None, :], (N, rep))
        z = jnp.concatenate([lat, tau], axis=1)
        h1 = jnp.tanh(z @ (p["olw0"][i] ** 2) + p["ob0"][i])
        out = jax.nn.softplus(h1 @ (p["olw1"][i] ** 2) + p["ob1"][i])
        sr.append(-(tau * out)[..., None])
        lb = jax.nn.log_softmax(p["competing"][i], axis=0)
        beta.append(jnp.broadcast_to(lb[None, :, None], (N, risks, 1)))
    return log_alphas, jnp.concatenate(beta, -1), jnp.concatenate(sr, -1)


# ------------------------------ main ----------------------------------------

if __name__ == "__main__":
    # Small config consistent with the module defaults (scaled down):
    N, inputdim = 8, 16
    layers = [32, 32, 32]
    representation = 16
    layers_surv = [32]
    k, risks = 3, 1
    hs = layers_surv[0]

    key = jax.random.PRNGKey(0)
    ks = jax.random.split(key, 20)

    def lin(kw, kb, fan_in, fan_out, scale=0.2):
        w = scale * jax.random.normal(kw, (fan_in, fan_out), jnp.float32)
        b = scale * jax.random.normal(kb, (fan_out,), jnp.float32)
        return w, b

    params = {}
    params["pw0"], params["pb0"] = lin(ks[0], ks[1], inputdim, layers[0])
    params["pw1"], params["pb1"] = lin(ks[2], ks[3], layers[0], layers[1])
    params["pw2"], params["pb2"] = lin(ks[4], ks[5], layers[1], layers[2])
    params["pw3"], params["pb3"] = lin(ks[6], ks[7], layers[2], k)

    params["latents"] = jax.random.normal(ks[8], (k, representation), jnp.float32)
    # PositiveLinear "log_weight" params (squared before use), stacked over clusters
    params["olw0"] = 0.3 * jnp.abs(
        jax.random.normal(ks[9], (k, representation + 1, hs), jnp.float32))
    params["ob0"] = 0.1 * jax.random.normal(ks[10], (k, hs), jnp.float32)
    params["olw1"] = 0.3 * jnp.abs(
        jax.random.normal(ks[11], (k, hs, risks), jnp.float32))
    params["ob1"] = 0.1 * jax.random.normal(ks[12], (k, risks), jnp.float32)
    params["competing"] = jax.random.normal(ks[13], (k, risks), jnp.float32)

    x = jax.random.normal(ks[14], (N, inputdim), jnp.float32)
    horizon = jax.random.uniform(ks[15], (N,), jnp.float32, 0.1, 5.0)

    # --- small-batch check -------------------------------------------------
    log_alphas, log_beta, log_sr, tau_outcome = nsc_forward(x, horizon, params)
    jax.block_until_ready((log_alphas, log_beta, log_sr))

    ra, rb, rs = nsc_reference(x, horizon, params)
    assert log_alphas.shape == (N, 1, k)
    assert log_beta.shape == (N, risks, k)
    assert log_sr.shape == (N, risks, k)
    assert len(tau_outcome) == k and tau_outcome[0].shape == (N, 1)
    np.testing.assert_allclose(np.asarray(log_alphas), np.asarray(ra), rtol=2e-5, atol=2e-5)
    np.testing.assert_allclose(np.asarray(log_beta), np.asarray(rb), rtol=2e-5, atol=2e-5)
    np.testing.assert_allclose(np.asarray(log_sr), np.asarray(rs), rtol=2e-5, atol=2e-5)

    # --- multi-step grid + partial last block check -------------------------
    N2 = 200
    x2 = jax.random.normal(ks[16], (N2, inputdim), jnp.float32)
    hz2 = jax.random.uniform(ks[17], (N2,), jnp.float32, 0.1, 5.0)
    la2, lb2, ls2, _ = nsc_forward(x2, hz2, params, tile_n=64)
    jax.block_until_ready((la2, lb2, ls2))
    ra2, rb2, rs2 = nsc_reference(x2, hz2, params)
    np.testing.assert_allclose(np.asarray(la2), np.asarray(ra2), rtol=2e-5, atol=2e-5)
    np.testing.assert_allclose(np.asarray(lb2), np.asarray(rb2), rtol=2e-5, atol=2e-5)
    np.testing.assert_allclose(np.asarray(ls2), np.asarray(rs2), rtol=2e-5, atol=2e-5)

    print("KERNEL_OK")
</pallas_src>

<mosaic_0001>
module attributes {stable_mosaic.version = 11 : i64} {
  func.func @nsc_kernel(%arg0: i32, %arg1: memref<8x17xf32, #tpu.memory_space<vmem>>, %arg2: memref<17x32xf32, #tpu.memory_space<vmem>>, %arg3: memref<32x32xf32, #tpu.memory_space<vmem>>, %arg4: memref<32x32xf32, #tpu.memory_space<vmem>>, %arg5: memref<128x6xf32, #tpu.memory_space<vmem>>, %arg6: memref<8x96xf32, #tpu.memory_space<vmem>>, %arg7: memref<8x6xf32, #tpu.memory_space<vmem>>) attributes {dimension_semantics = [#tpu.dimension_semantics<parallel>], iteration_bounds = array<i64: 1>, scalar_prefetch = 0 : i64, scratch_operands = 0 : i64, tpu.core_type = #tpu.core_type<tc>, window_params = [{transform_indices = @transform_0, window_bounds = array<i64: 8, 17>}, {pipeline_mode = #tpu.pipeline_mode<synchronous>, transform_indices = @transform_1, window_bounds = array<i64: 17, 32>}, {pipeline_mode = #tpu.pipeline_mode<synchronous>, transform_indices = @transform_2, window_bounds = array<i64: 32, 32>}, {pipeline_mode = #tpu.pipeline_mode<synchronous>, transform_indices = @transform_3, window_bounds = array<i64: 32, 32>}, {pipeline_mode = #tpu.pipeline_mode<synchronous>, transform_indices = @transform_4, window_bounds = array<i64: 128, 6>}, {pipeline_mode = #tpu.pipeline_mode<synchronous>, transform_indices = @transform_5, window_bounds = array<i64: 8, 96>}, {transform_indices = @transform_6, window_bounds = array<i64: 8, 6>}]} {
    %c0 = arith.constant 0 : index
    %c0_0 = arith.constant 0 : index
    %0 = vector.load %arg1[%c0, %c0_0] : memref<8x17xf32, #tpu.memory_space<vmem>>, vector<8x17xf32>
    %1 = vector.extract_strided_slice %0 {offsets = [0, 16], sizes = [8, 1], strides = [1, 1]} : vector<8x17xf32> to vector<8x1xf32>
    %c0_1 = arith.constant 0 : index
    %c0_2 = arith.constant 0 : index
    %2 = vector.load %arg6[%c0_1, %c0_2] : memref<8x96xf32, #tpu.memory_space<vmem>>, vector<1x32xf32>
    %c1 = arith.constant 1 : index
    %c0_3 = arith.constant 0 : index
    %3 = vector.load %arg6[%c1, %c0_3] : memref<8x96xf32, #tpu.memory_space<vmem>>, vector<1x32xf32>
    %c2 = arith.constant 2 : index
    %c0_4 = arith.constant 0 : index
    %4 = vector.load %arg6[%c2, %c0_4] : memref<8x96xf32, #tpu.memory_space<vmem>>, vector<1x32xf32>
    %c3 = arith.constant 3 : index
    %c0_5 = arith.constant 0 : index
    %5 = vector.load %arg6[%c3, %c0_5] : memref<8x96xf32, #tpu.memory_space<vmem>>, vector<1x96xf32>
    %c4 = arith.constant 4 : index
    %c0_6 = arith.constant 0 : index
    %6 = vector.load %arg6[%c4, %c0_6] : memref<8x96xf32, #tpu.memory_space<vmem>>, vector<1x96xf32>
    %c5 = arith.constant 5 : index
    %c0_7 = arith.constant 0 : index
    %7 = vector.load %arg6[%c5, %c0_7] : memref<8x96xf32, #tpu.memory_space<vmem>>, vector<1x6xf32>
    %c0_8 = arith.constant 0 : index
    %c0_9 = arith.constant 0 : index
    %8 = vector.load %arg2[%c0_8, %c0_9] : memref<17x32xf32, #tpu.memory_space<vmem>>, vector<17x32xf32>
    %cst = arith.constant dense<0.000000e+00> : vector<8x32xf32>
    %9 = tpu.matmul %0, %8, %cst {dimension_numbers = #tpu.dot_dimension_numbers<[1], [0], [0], [1], [0, 0, 1, 1], [], []>} : vector<8x17xf32>, vector<17x32xf32>, vector<8x32xf32> -> vector<8x32xf32>
    %10 = vector.broadcast %2 : vector<1x32xf32> to vector<8x32xf32>
    %11 = arith.addf %9, %10 : vector<8x32xf32>
    %cst_10 = arith.constant 0.000000e+00 : f32
    %cst_11 = arith.constant 6.000000e+00 : f32
    %12 = vector.broadcast %cst_10 : f32 to vector<8x32xf32>
    %13 = arith.maximumf %12, %11 : vector<8x32xf32>
    %14 = vector.broadcast %cst_11 : f32 to vector<8x32xf32>
    %15 = arith.minimumf %14, %13 : vector<8x32xf32>
    %c0_12 = arith.constant 0 : index
    %c0_13 = arith.constant 0 : index
    %16 = vector.load %arg3[%c0_12, %c0_13] : memref<32x32xf32, #tpu.memory_space<vmem>>, vector<32x32xf32>
    %cst_14 = arith.constant dense<0.000000e+00> : vector<8x32xf32>
    %17 = tpu.matmul %15, %16, %cst_14 {dimension_numbers = #tpu.dot_dimension_numbers<[1], [0], [0], [1], [0, 0, 1, 1], [], []>} : vector<8x32xf32>, vector<32x32xf32>, vector<8x32xf32> -> vector<8x32xf32>
    %18 = vector.broadcast %3 : vector<1x32xf32> to vector<8x32xf32>
    %19 = arith.addf %17, %18 : vector<8x32xf32>
    %cst_15 = arith.constant 0.000000e+00 : f32
    %cst_16 = arith.constant 6.000000e+00 : f32
    %20 = vector.broadcast %cst_15 : f32 to vector<8x32xf32>
    %21 = arith.maximumf %20, %19 : vector<8x32xf32>
    %22 = vector.broadcast %cst_16 : f32 to vector<8x32xf32>
    %23 = arith.minimumf %22, %21 : vector<8x32xf32>
    %c0_17 = arith.constant 0 : index
    %c0_18 = arith.constant 0 : index
    %24 = vector.load %arg4[%c0_17, %c0_18] : memref<32x32xf32, #tpu.memory_space<vmem>>, vector<32x32xf32>
    %cst_19 = arith.constant dense<0.000000e+00> : vector<8x32xf32>
    %25 = tpu.matmul %23, %24, %cst_19 {dimension_numbers = #tpu.dot_dimension_numbers<[1], [0], [0], [1], [0, 0, 1, 1], [], []>} : vector<8x32xf32>, vector<32x32xf32>, vector<8x32xf32> -> vector<8x32xf32>
    %26 = vector.broadcast %4 : vector<1x32xf32> to vector<8x32xf32>
    %27 = arith.addf %25, %26 : vector<8x32xf32>
    %cst_20 = arith.constant 0.000000e+00 : f32
    %cst_21 = arith.constant 6.000000e+00 : f32
    %28 = vector.broadcast %cst_20 : f32 to vector<8x32xf32>
    %29 = arith.maximumf %28, %27 : vector<8x32xf32>
    %30 = vector.broadcast %cst_21 : f32 to vector<8x32xf32>
    %31 = arith.minimumf %30, %29 : vector<8x32xf32>
    %32 = vector.broadcast %1 : vector<8x1xf32> to vector<8x96xf32>
    %33 = vector.broadcast %6 : vector<1x96xf32> to vector<8x96xf32>
    %34 = arith.mulf %32, %33 : vector<8x96xf32>
    %35 = vector.broadcast %5 : vector<1x96xf32> to vector<8x96xf32>
    %36 = arith.addf %35, %34 : vector<8x96xf32>
    %37 = math.tanh %36 : vector<8x96xf32>
    %38 = tpu.concatenate %31, %37 in 1 : vector<8x32xf32>, vector<8x96xf32> -> vector<8x128xf32>
    %c0_22 = arith.constant 0 : index
    %c0_23 = arith.constant 0 : index
    %39 = vector.load %arg5[%c0_22, %c0_23] : memref<128x6xf32, #tpu.memory_space<vmem>>, vector<128x6xf32>
    %cst_24 = arith.constant dense<0.000000e+00> : vector<8x6xf32>
    %40 = tpu.matmul %38, %39, %cst_24 {dimension_numbers = #tpu.dot_dimension_numbers<[1], [0], [0], [1], [0, 0, 1, 1], [], []>} : vector<8x128xf32>, vector<128x6xf32>, vector<8x6xf32> -> vector<8x6xf32>
    %41 = vector.broadcast %7 : vector<1x6xf32> to vector<8x6xf32>
    %42 = arith.addf %40, %41 : vector<8x6xf32>
    %43 = vector.extract_strided_slice %42 {offsets = [0, 0], sizes = [8, 3], strides = [1, 1]} : vector<8x6xf32> to vector<8x3xf32>
    %cst_25 = arith.constant dense<0xFF800000> : vector<8xf32>
    %44 = vector.multi_reduction <maximumf>, %43, %cst_25 [1] : vector<8x3xf32> to vector<8xf32>
    %45 = vector.shape_cast %44 : vector<8xf32> to vector<8x1xf32>
    %46 = vector.broadcast %45 : vector<8x1xf32> to vector<8x3xf32>
    %47 = arith.subf %43, %46 : vector<8x3xf32>
    %48 = vector.broadcast %45 : vector<8x1xf32> to vector<8x3xf32>
    %49 = arith.subf %43, %48 : vector<8x3xf32>
    %50 = math.exp %49 : vector<8x3xf32>
    %cst_26 = arith.constant dense<0.000000e+00> : vector<8xf32>
    %51 = vector.multi_reduction <add>, %50, %cst_26 [1] : vector<8x3xf32> to vector<8xf32>
    %52 = vector.shape_cast %51 : vector<8xf32> to vector<8x1xf32>
    %53 = math.log %52 : vector<8x1xf32>
    %54 = vector.broadcast %53 : vector<8x1xf32> to vector<8x3xf32>
    %55 = arith.subf %47, %54 : vector<8x3xf32>
    %56 = vector.extract_strided_slice %42 {offsets = [0, 3], sizes = [8, 3], strides = [1, 1]} : vector<8x6xf32> to vector<8x3xf32>
    %cst_27 = arith.constant 0.000000e+00 : f32
    %57 = vector.broadcast %cst_27 : f32 to vector<8x3xf32>
    %58 = arith.maximumf %56, %57 : vector<8x3xf32>
    %59 = vector.broadcast %cst_27 : f32 to vector<8x3xf32>
    %60 = arith.subf %56, %59 : vector<8x3xf32>
    %61 = arith.cmpf one, %60, %60 : vector<8x3xf32>
    %62 = vector.broadcast %cst_27 : f32 to vector<8x3xf32>
    %63 = arith.addf %56, %62 : vector<8x3xf32>
    %64 = math.absf %60 : vector<8x3xf32>
    %cst_28 = arith.constant 0.000000e+00 : f32
    %65 = vector.broadcast %cst_28 : f32 to vector<8x3xf32>
    %66 = arith.subf %65, %64 : vector<8x3xf32>
    %67 = math.exp %66 : vector<8x3xf32>
    %68 = math.log1p %67 : vector<8x3xf32>
    %69 = arith.addf %58, %68 : vector<8x3xf32>
    %70 = arith.select %61, %63, %69 : vector<8x3xi1>, vector<8x3xf32>
    %71 = vector.broadcast %1 : vector<8x1xf32> to vector<8x3xf32>
    %72 = arith.mulf %71, %70 : vector<8x3xf32>
    %cst_29 = arith.constant 0.000000e+00 : f32
    %73 = vector.broadcast %cst_29 : f32 to vector<8x3xf32>
    %74 = arith.subf %73, %72 : vector<8x3xf32>
    %75 = tpu.concatenate %55, %74 in 1 : vector<8x3xf32>, vector<8x3xf32> -> vector<8x6xf32>
    %c0_30 = arith.constant 0 : index
    %c0_31 = arith.constant 0 : index
    %76 = vector.load %arg7[%c0_30, %c0_31] : memref<8x6xf32, #tpu.memory_space<vmem>>, vector<8x6xf32>
    tpu.vector_store %arg7[%c0_30, %c0_31], %75 {strides = array<i32>} : memref<8x6xf32, #tpu.memory_space<vmem>>, vector<8x6xf32>,
    return
  }
  func.func @transform_0(%arg0: i32) -> (i32, i32) {
    %c0_i32 = arith.constant 0 : i32
    %c0_i32_0 = arith.constant 0 : i32
    return %arg0, %c0_i32 : i32, i32
  }
  func.func @transform_1(%arg0: i32) -> (i32, i32) {
    %c0_i32 = arith.constant 0 : i32
    %c0_i32_0 = arith.constant 0 : i32
    %c0_i32_1 = arith.constant 0 : i32
    return %c0_i32, %c0_i32_0 : i32, i32
  }
  func.func @transform_2(%arg0: i32) -> (i32, i32) {
    %c0_i32 = arith.constant 0 : i32
    %c0_i32_0 = arith.constant 0 : i32
    %c0_i32_1 = arith.constant 0 : i32
    return %c0_i32, %c0_i32_0 : i32, i32
  }
  func.func @transform_3(%arg0: i32) -> (i32, i32) {
    %c0_i32 = arith.constant 0 : i32
    %c0_i32_0 = arith.constant 0 : i32
    %c0_i32_1 = arith.constant 0 : i32
    return %c0_i32, %c0_i32_0 : i32, i32
  }
  func.func @transform_4(%arg0: i32) -> (i32, i32) {
    %c0_i32 = arith.constant 0 : i32
    %c0_i32_0 = arith.constant 0 : i32
    %c0_i32_1 = arith.constant 0 : i32
    return %c0_i32, %c0_i32_0 : i32, i32
  }
  func.func @transform_5(%arg0: i32) -> (i32, i32) {
    %c0_i32 = arith.constant 0 : i32
    %c0_i32_0 = arith.constant 0 : i32
    %c0_i32_1 = arith.constant 0 : i32
    return %c0_i32, %c0_i32_0 : i32, i32
  }
  func.func @transform_6(%arg0: i32) -> (i32, i32) {
    %c0_i32 = arith.constant 0 : i32
    %c0_i32_0 = arith.constant 0 : i32
    return %arg0, %c0_i32 : i32, i32
  }
}

</mosaic_0001>

<llo_original>
// kernel: tpu_custom_call.1
$region0: #{tpu_custom_call.1}
  #allocation0 [shape = 'u32[]', space=smem, size = 0x4, offset = 0x4, fixed_abs, tag = 'smem constant byte address 0x4 - core index']
  #allocation1 [shape = 'u32[144,128]{1,0:T(1,128)}', space=vmem, size = 0x12000, scoped, tag = 'internal scratch']
  %s0 = inlined_call_operand.vmem [shape: f32[8,17], index: 0, kind: input, shape index: {}]
  %s1 = inlined_call_operand.vmem [shape: f32[17,32], index: 1, kind: input, shape index: {}]
  %s2 = inlined_call_operand.vmem [shape: f32[32,32], index: 2, kind: input, shape index: {}]
  %s3 = inlined_call_operand.vmem [shape: f32[32,32], index: 3, kind: input, shape index: {}]
  %s4 = inlined_call_operand.vmem [shape: f32[128,6], index: 4, kind: input, shape index: {}]
  %s5 = inlined_call_operand.vmem [shape: f32[8,96], index: 5, kind: input, shape index: {}]
  %s6 = inlined_call_operand.hbm [shape: f32[8,6], index: 6, kind: output, shape index: {}]
  %s7 = sld [smem:[#allocation0]]
  $region34: #{tpu_custom_call.1} parent=0
    _
  %s9 = ssub.s32 1, %s7
  %s10 = scalar_select 0, %s9, %s7
  $region1: #{tpu_custom_call.1} parent=0
    #allocation2 [shape = 'u8[4096]{0}', space=vmem, size = 0x1000, scoped, tag = 'output window, operand 0, single buffered']
    #allocation3 [shape = 's32[1]{0}', space=sflag, size = 0x4, scoped, tag = 'scoped memory for tpu_custom_call.1']
    %11 = vsyncpa [#allocation3], 0
    // Predicated region
    $region2: #{tpu_custom_call.1} parent=1 // pred_check
      _
    $region3: #{tpu_custom_call.1} parent=1 // pred_check_branch
      %13 = sbr.rel (0) target = $region5
    $region4: #{tpu_custom_call.1} parent=1 // pred_region
      _
    $region5: #{tpu_custom_call.1} parent=1 // pred_fallthru
      _
    // Predicated region
    $region6: #{tpu_custom_call.1} parent=1 // pred_check
      _
    $region7: #{tpu_custom_call.1} parent=1 // pred_check_branch
      %15 = sbr.rel (0) target = $region9
    $region8: #{tpu_custom_call.1} parent=1 // pred_region
      _
    $region9: #{tpu_custom_call.1} parent=1 // pred_fallthru
      _
    // Predicated region
    $region10: #{tpu_custom_call.1} parent=1 // pred_check
      _
    $region11: #{tpu_custom_call.1} parent=1 // pred_check_branch
      %17 = sbr.rel (0) target = $region13
    $region12: #{tpu_custom_call.1} parent=1 // pred_region
      _
    $region13: #{tpu_custom_call.1} parent=1 // pred_fallthru
      _
    // Predicated region
    $region14: #{tpu_custom_call.1} parent=1 // pred_check
      _
    $region15: #{tpu_custom_call.1} parent=1 // pred_check_branch
      %19 = sbr.rel (0) target = $region17
    $region16: #{tpu_custom_call.1} parent=1 // pred_region
      _
    $region17: #{tpu_custom_call.1} parent=1 // pred_fallthru
      _
    // Predicated region
    $region18: #{tpu_custom_call.1} parent=1 // pred_check
      _
    $region19: #{tpu_custom_call.1} parent=1 // pred_check_branch
      %21 = sbr.rel (0) target = $region21
    $region20: #{tpu_custom_call.1} parent=1 // pred_region
      _
    $region21: #{tpu_custom_call.1} parent=1 // pred_fallthru
      _
    // Predicated region
    $region22: #{tpu_custom_call.1} parent=1 // pred_check
      _
    $region23: #{tpu_custom_call.1} parent=1 // pred_check_branch
      %23 = sbr.rel (0) target = $region25
    $region24: #{tpu_custom_call.1} parent=1 // pred_region
      _
    $region25: #{tpu_custom_call.1} parent=1 // pred_fallthru
      _
    %v24 = vld [vmem:[%s0] sm:$0xff]
    %v25 = vld [vmem:[%s5] sm:$0x1]
    %v26 = vld [vmem:[%s5 + $0x1] sm:$0x1]
    %v27 = vld [vmem:[%s5 + $0x2] sm:$0x1]
    %v28 = vld [vmem:[%s5 + $0x3] sm:$0x1]
    %v29 = vld [vmem:[%s5 + $0x4] sm:$0x1]
    %v30 = vld [vmem:[%s5 + $0x5] sm:$0x1]
    %v31 = vld [vmem:[%s1] sm:$0xff]
    %v32 = vld [vmem:[%s1 + $0x8] sm:$0xff]
    %v33 = vld [vmem:[%s1 + $0x10] sm:$0x1]
    %v34 = vlaneseq
    %v35 = vshrl.u32 %v34, 7
    %v36 = vsub.s32 0, %v35
    %v37 = vrot.slane %v25, %v36
    %vm38 = vcmask 138240
    %v40 = vsel %vm38, %v24, 0
    %vm42 = vcmask 1040384
    %v44 = vsel %vm42, %v33, 0
    %46 = vmatprep.subr.mxu0 0.0
    %47 = vmatpush1.msra.mxu0 %v31
    %48 = vmatprep.subr.mxu0 0.0
    %49 = vmatpush1.msra.mxu0 %v32
    %50 = vmatprep.subr.mxu0 0.0
    %51 = vmatpush1.msra.mxu0 %v44
    %52 = vmatprep.subr.mxu0 0.0
    %53 = vmatpush1.msra.mxu0 0.0
    %54 = vmatprep.subr.mxu0 0.0
    %55 = vmatpush1.msra.mxu0 0.0
    %56 = vmatprep.subr.mxu0 0.0
    %57 = vmatpush1.msra.mxu0 0.0
    %58 = vmatprep.subr.mxu0 0.0
    %59 = vmatpush1.msra.mxu0 0.0
    %60 = vmatprep.subr.mxu0 0.0
    %61 = vmatpush1.msra.mxu0 0.0
    %62 = vmatprep.subr.mxu0 0.0
    %63 = vmatpush1.msra.mxu0 0.0
    %64 = vmatprep.subr.mxu0 0.0
    %65 = vmatpush1.msra.mxu0 0.0
    %66 = vmatprep.subr.mxu0 0.0
    %67 = vmatpush1.msra.mxu0 0.0
    %68 = vmatprep.subr.mxu0 0.0
    %69 = vmatpush1.msra.mxu0 0.0
    %70 = vmatprep.subr.mxu0 0.0
    %71 = vmatpush1.msra.mxu0 0.0
    %72 = vmatprep.subr.mxu0 0.0
    %73 = vmatpush1.msra.mxu0 0.0
    %74 = vmatprep.subr.mxu0 0.0
    %75 = vmatpush1.msra.mxu0 0.0
    %76 = vmatprep.subr.mxu0 0.0
    %77 = vmatpush1.msra.mxu0 0.0
    %78 = vmatprep.subr.mxu0 0.0
    %79 = vmatpush1.msra.mxu0 0.0
    %80 = vmatprep.subr.mxu0 0.0
    %81 = vmatpush1.msra.mxu0 0.0
    %82 = vmatprep.subr.mxu0 0.0
    %83 = vmatpush1.msra.mxu0 0.0
    %84 = vmatprep.subr.mxu0 0.0
    %85 = vmatpush1.msra.mxu0 0.0
    %86 = vmatprep.subr.mxu0 0.0
    %87 = vmatpush1.msra.mxu0 0.0
    %88 = vmatprep.subr.mxu0 0.0
    %89 = vmatpush1.msra.mxu0 0.0
    %90 = vmatprep.subr.mxu0 0.0
    %91 = vmatpush1.msra.mxu0 0.0
    %92 = vmatprep.subr.mxu0 0.0
    %93 = vmatpush1.msra.mxu0 0.0
    %94 = vmatprep.subr.mxu0 0.0
    %95 = vmatpush1.msra.mxu0 0.0
    %96 = vmatprep.subr.mxu0 0.0
    %97 = vmatpush1.msra.mxu0 0.0
    %98 = vmatprep.subr.mxu0 0.0
    %99 = vmatpush1.msra.mxu0 0.0
    %100 = vmatprep.subr.mxu0 0.0
    %101 = vmatpush1.msra.mxu0 0.0
    %102 = vmatprep.subr.mxu0 0.0
    %103 = vmatpush1.msra.mxu0 0.0
    %104 = vmatprep.subr.mxu0 0.0
    %105 = vmatpush1.msra.mxu0 0.0
    %106 = vmatprep.subr.mxu0 0.0
    %107 = vmatpush1.msra.mxu0 0.0
    %108 = vmatprep.subr.mxu0 0.0
    %109 = vmatpush1.msra.mxu0 0.0
    %110 = vmatprep.mubr.f32.mxu0 0.0
    %111 = vmatmul.mubr.f32.gmra.mrb[0].mxu0 %v40
    %v112 = vpop.f32.mrb[0].mxu0
    %v113 = vadd.f32 %v37, %v112
    %v114 = vpop.f32.mrb[0].mxu0
    %115 = vdwg.mxu0
    %v116 = vmax.f32 %v113, 0.0
    %v117 = vmin.f32 %v116, 6.0
    %v118 = vld [vmem:[%s2] sm:$0xff]
    %v119 = vld [vmem:[%s2 + $0x8] sm:$0xff]
    %v120 = vld [vmem:[%s2 + $0x10] sm:$0xff]
    %v121 = vld [vmem:[%s2 + $0x18] sm:$0xff]
    %v122 = vlaneseq
    %v123 = vshrl.u32 %v122, 7
    %v124 = vsub.s32 0, %v123
    %v125 = vrot.slane %v26, %v124
    %vm126 = vcmask 261120
    %v128 = vsel %vm126, %v117, 0
    %130 = vmatprep.subr.mxu0 0.0
    %131 = vmatpush1.msra.mxu0 %v118
    %132 = vmatprep.subr.mxu0 0.0
    %133 = vmatpush1.msra.mxu0 %v119
    %134 = vmatprep.subr.mxu0 0.0
    %135 = vmatpush1.msra.mxu0 %v120
    %136 = vmatprep.subr.mxu0 0.0
    %137 = vmatpush1.msra.mxu0 %v121
    %138 = vmatprep.subr.mxu0 0.0
    %139 = vmatpush1.msra.mxu0 0.0
    %140 = vmatprep.subr.mxu0 0.0
    %141 = vmatpush1.msra.mxu0 0.0
    %142 = vmatprep.subr.mxu0 0.0
    %143 = vmatpush1.msra.mxu0 0.0
    %144 = vmatprep.subr.mxu0 0.0
    %145 = vmatpush1.msra.mxu0 0.0
    %146 = vmatprep.subr.mxu0 0.0
    %147 = vmatpush1.msra.mxu0 0.0
    %148 = vmatprep.subr.mxu0 0.0
    %149 = vmatpush1.msra.mxu0 0.0
    %150 = vmatprep.subr.mxu0 0.0
    %151 = vmatpush1.msra.mxu0 0.0
    %152 = vmatprep.subr.mxu0 0.0
    %153 = vmatpush1.msra.mxu0 0.0
    %154 = vmatprep.subr.mxu0 0.0
    %155 = vmatpush1.msra.mxu0 0.0
    %156 = vmatprep.subr.mxu0 0.0
    %157 = vmatpush1.msra.mxu0 0.0
    %158 = vmatprep.subr.mxu0 0.0
    %159 = vmatpush1.msra.mxu0 0.0
    %160 = vmatprep.subr.mxu0 0.0
    %161 = vmatpush1.msra.mxu0 0.0
    %162 = vmatprep.subr.mxu0 0.0
    %163 = vmatpush1.msra.mxu0 0.0
    %164 = vmatprep.subr.mxu0 0.0
    %165 = vmatpush1.msra.mxu0 0.0
    %166 = vmatprep.subr.mxu0 0.0
    %167 = vmatpush1.msra.mxu0 0.0
    %168 = vmatprep.subr.mxu0 0.0
    %169 = vmatpush1.msra.mxu0 0.0
    %170 = vmatprep.subr.mxu0 0.0
    %171 = vmatpush1.msra.mxu0 0.0
    %172 = vmatprep.subr.mxu0 0.0
    %173 = vmatpush1.msra.mxu0 0.0
    %174 = vmatprep.subr.mxu0 0.0
    %175 = vmatpush1.msra.mxu0 0.0
    %176 = vmatprep.subr.mxu0 0.0
    %177 = vmatpush1.msra.mxu0 0.0
    %178 = vmatprep.subr.mxu0 0.0
    %179 = vmatpush1.msra.mxu0 0.0
    %180 = vmatprep.subr.mxu0 0.0
    %181 = vmatpush1.msra.mxu0 0.0
    %182 = vmatprep.subr.mxu0 0.0
    %183 = vmatpush1.msra.mxu0 0.0
    %184 = vmatprep.subr.mxu0 0.0
    %185 = vmatpush1.msra.mxu0 0.0
    %186 = vmatprep.subr.mxu0 0.0
    %187 = vmatpush1.msra.mxu0 0.0
    %188 = vmatprep.subr.mxu0 0.0
    %189 = vmatpush1.msra.mxu0 0.0
    %190 = vmatprep.subr.mxu0 0.0
    %191 = vmatpush1.msra.mxu0 0.0
    %192 = vmatprep.subr.mxu0 0.0
    %193 = vmatpush1.msra.mxu0 0.0
    %194 = vmatprep.mubr.f32.mxu0 0.0
    %195 = vmatmul.mubr.f32.gmra.mrb[0].mxu0 %v128
    %v196 = vpop.f32.mrb[0].mxu0
    %v197 = vadd.f32 %v125, %v196
    %v198 = vpop.f32.mrb[0].mxu0
    %199 = vdwg.mxu0
    %v200 = vmax.f32 %v197, 0.0
    %v201 = vmin.f32 %v200, 6.0
    %v202 = vld [vmem:[%s3] sm:$0xff]
    %v203 = vld [vmem:[%s3 + $0x8] sm:$0xff]
    %v204 = vld [vmem:[%s3 + $0x10] sm:$0xff]
    %v205 = vld [vmem:[%s3 + $0x18] sm:$0xff]
    %v206 = vlaneseq
    %v207 = vshrl.u32 %v206, 7
    %v208 = vsub.s32 0, %v207
    %v209 = vrot.slane %v27, %v208
    %v211 = vsel %vm126, %v201, 0
    %213 = vmatprep.subr.mxu0 0.0
    %214 = vmatpush1.msra.mxu0 %v202
    %215 = vmatprep.subr.mxu0 0.0
    %216 = vmatpush1.msra.mxu0 %v203
    %217 = vmatprep.subr.mxu0 0.0
    %218 = vmatpush1.msra.mxu0 %v204
    %219 = vmatprep.subr.mxu0 0.0
    %220 = vmatpush1.msra.mxu0 %v205
    %221 = vmatprep.subr.mxu0 0.0
    %222 = vmatpush1.msra.mxu0 0.0
    %223 = vmatprep.subr.mxu0 0.0
    %224 = vmatpush1.msra.mxu0 0.0
    %225 = vmatprep.subr.mxu0 0.0
    %226 = vmatpush1.msra.mxu0 0.0
    %227 = vmatprep.subr.mxu0 0.0
    %228 = vmatpush1.msra.mxu0 0.0
    %229 = vmatprep.subr.mxu0 0.0
    %230 = vmatpush1.msra.mxu0 0.0
    %231 = vmatprep.subr.mxu0 0.0
    %232 = vmatpush1.msra.mxu0 0.0
    %233 = vmatprep.subr.mxu0 0.0
    %234 = vmatpush1.msra.mxu0 0.0
    %235 = vmatprep.subr.mxu0 0.0
    %236 = vmatpush1.msra.mxu0 0.0
    %237 = vmatprep.subr.mxu0 0.0
    %238 = vmatpush1.msra.mxu0 0.0
    %239 = vmatprep.subr.mxu0 0.0
    %240 = vmatpush1.msra.mxu0 0.0
    %241 = vmatprep.subr.mxu0 0.0
    %242 = vmatpush1.msra.mxu0 0.0
    %243 = vmatprep.subr.mxu0 0.0
    %244 = vmatpush1.msra.mxu0 0.0
    %245 = vmatprep.subr.mxu0 0.0
    %246 = vmatpush1.msra.mxu0 0.0
    %247 = vmatprep.subr.mxu0 0.0
    %248 = vmatpush1.msra.mxu0 0.0
    %249 = vmatprep.subr.mxu0 0.0
    %250 = vmatpush1.msra.mxu0 0.0
    %251 = vmatprep.subr.mxu0 0.0
    %252 = vmatpush1.msra.mxu0 0.0
    %253 = vmatprep.subr.mxu0 0.0
    %254 = vmatpush1.msra.mxu0 0.0
    %255 = vmatprep.subr.mxu0 0.0
    %256 = vmatpush1.msra.mxu0 0.0
    %257 = vmatprep.subr.mxu0 0.0
    %258 = vmatpush1.msra.mxu0 0.0
    %259 = vmatprep.subr.mxu0 0.0
    %260 = vmatpush1.msra.mxu0 0.0
    %261 = vmatprep.subr.mxu0 0.0
    %262 = vmatpush1.msra.mxu0 0.0
    %263 = vmatprep.subr.mxu0 0.0
    %264 = vmatpush1.msra.mxu0 0.0
    %265 = vmatprep.subr.mxu0 0.0
    %266 = vmatpush1.msra.mxu0 0.0
    %267 = vmatprep.subr.mxu0 0.0
    %268 = vmatpush1.msra.mxu0 0.0
    %269 = vmatprep.subr.mxu0 0.0
    %270 = vmatpush1.msra.mxu0 0.0
    %271 = vmatprep.subr.mxu0 0.0
    %272 = vmatpush1.msra.mxu0 0.0
    %273 = vmatprep.subr.mxu0 0.0
    %274 = vmatpush1.msra.mxu0 0.0
    %275 = vmatprep.subr.mxu0 0.0
    %276 = vmatpush1.msra.mxu0 0.0
    %277 = vmatprep.mubr.f32.mxu0 0.0
    %278 = vmatmul.mubr.f32.gmra.mrb[0].mxu0 %v211
    %v279 = vpop.f32.mrb[0].mxu0
    %v280 = vadd.f32 %v209, %v279
    %v281 = vpop.f32.mrb[0].mxu0
    %282 = vdwg.mxu0
    %v283 = vmax.f32 %v280, 0.0
    %v284 = vmin.f32 %v283, 6.0
    %285 = vset.pattern.permute.xlu0 16
    %286 = vperm.xlu0 %285, %v24
    %v287 = vpop.permute.xlu0 %286
    %v289 = vlaneseq
    %v290 = vshrl.u32 %v289, 7
    %v291 = vsub.s32 0, %v290
    %v292 = vrot.slane %v29, %v291
    %v293 = vmul.f32 %v287, %v292
    %v294 = vlaneseq
    %v295 = vshrl.u32 %v294, 7
    %v296 = vsub.s32 0, %v295
    %v297 = vrot.slane %v28, %v296
    %v298 = vadd.f32 %v297, %v293
    %v299 = vtanh.pop %v298
    %301 = vrot.lane.b32.xlu0 %v299, 32
    %v302 = vpop.permute.xlu0 %301
    %v304 = vsel %vm126, %v284, %v302
    %v305 = vld [vmem:[%s4] sm:$0xff]
    %v306 = vld [vmem:[%s4 + $0x8] sm:$0xff]
    %v307 = vld [vmem:[%s4 + $0x10] sm:$0xff]
    %v308 = vld [vmem:[%s4 + $0x18] sm:$0xff]
    %v309 = vld [vmem:[%s4 + $0x20] sm:$0xff]
    %v310 = vld [vmem:[%s4 + $0x28] sm:$0xff]
    %v311 = vld [vmem:[%s4 + $0x30] sm:$0xff]
    %v312 = vld [vmem:[%s4 + $0x38] sm:$0xff]
    %v313 = vld [vmem:[%s4 + $0x40] sm:$0xff]
    %v314 = vld [vmem:[%s4 + $0x48] sm:$0xff]
    %v315 = vld [vmem:[%s4 + $0x50] sm:$0xff]
    %v316 = vld [vmem:[%s4 + $0x58] sm:$0xff]
    %v317 = vld [vmem:[%s4 + $0x60] sm:$0xff]
    %v318 = vld [vmem:[%s4 + $0x68] sm:$0xff]
    %v319 = vld [vmem:[%s4 + $0x70] sm:$0xff]
    %v320 = vld [vmem:[%s4 + $0x78] sm:$0xff]
    %v321 = vlaneseq
    %v322 = vshrl.u32 %v321, 7
    %v323 = vsub.s32 0, %v322
    %v324 = vrot.slane %v30, %v323
    %325 = vmatprep.subr.mxu0 0.0
    %326 = vmatpush1.msra.mxu0 %v305
    %327 = vmatprep.subr.mxu0 0.0
    %328 = vmatpush1.msra.mxu0 %v306
    %329 = vmatprep.subr.mxu0 0.0
    %330 = vmatpush1.msra.mxu0 %v307
    %331 = vmatprep.subr.mxu0 0.0
    %332 = vmatpush1.msra.mxu0 %v308
    %333 = vmatprep.subr.mxu0 0.0
    %334 = vmatpush1.msra.mxu0 %v309
    %335 = vmatprep.subr.mxu0 0.0
    %336 = vmatpush1.msra.mxu0 %v310
    %337 = vmatprep.subr.mxu0 0.0
    %338 = vmatpush1.msra.mxu0 %v311
    %339 = vmatprep.subr.mxu0 0.0
    %340 = vmatpush1.msra.mxu0 %v312
    %341 = vmatprep.subr.mxu0 0.0
    %342 = vmatpush1.msra.mxu0 %v313
    %343 = vmatprep.subr.mxu0 0.0
    %344 = vmatpush1.msra.mxu0 %v314
    %345 = vmatprep.subr.mxu0 0.0
    %346 = vmatpush1.msra.mxu0 %v315
    %347 = vmatprep.subr.mxu0 0.0
    %348 = vmatpush1.msra.mxu0 %v316
    %349 = vmatprep.subr.mxu0 0.0
    %350 = vmatpush1.msra.mxu0 %v317
    %351 = vmatprep.subr.mxu0 0.0
    %352 = vmatpush1.msra.mxu0 %v318
    %353 = vmatprep.subr.mxu0 0.0
    %354 = vmatpush1.msra.mxu0 %v319
    %355 = vmatprep.subr.mxu0 0.0
    %356 = vmatpush1.msra.mxu0 %v320
    %357 = vmatprep.subr.mxu0 0.0
    %358 = vmatpush1.msra.mxu0 0.0
    %359 = vmatprep.subr.mxu0 0.0
    %360 = vmatpush1.msra.mxu0 0.0
    %361 = vmatprep.subr.mxu0 0.0
    %362 = vmatpush1.msra.mxu0 0.0
    %363 = vmatprep.subr.mxu0 0.0
    %364 = vmatpush1.msra.mxu0 0.0
    %365 = vmatprep.subr.mxu0 0.0
    %366 = vmatpush1.msra.mxu0 0.0
    %367 = vmatprep.subr.mxu0 0.0
    %368 = vmatpush1.msra.mxu0 0.0
    %369 = vmatprep.subr.mxu0 0.0
    %370 = vmatpush1.msra.mxu0 0.0
    %371 = vmatprep.subr.mxu0 0.0
    %372 = vmatpush1.msra.mxu0 0.0
    %373 = vmatprep.subr.mxu0 0.0
    %374 = vmatpush1.msra.mxu0 0.0
    %375 = vmatprep.subr.mxu0 0.0
    %376 = vmatpush1.msra.mxu0 0.0
    %377 = vmatprep.subr.mxu0 0.0
    %378 = vmatpush1.msra.mxu0 0.0
    %379 = vmatprep.subr.mxu0 0.0
    %380 = vmatpush1.msra.mxu0 0.0
    %381 = vmatprep.subr.mxu0 0.0
    %382 = vmatpush1.msra.mxu0 0.0
    %383 = vmatprep.subr.mxu0 0.0
    %384 = vmatpush1.msra.mxu0 0.0
    %385 = vmatprep.subr.mxu0 0.0
    %386 = vmatpush1.msra.mxu0 0.0
    %387 = vmatprep.subr.mxu0 0.0
    %388 = vmatpush1.msra.mxu0 0.0
    %389 = vmatprep.mubr.f32.mxu0 0.0
    %390 = vmatmul.mubr.f32.gmra.mrb[0].mxu0 %v304
    %v391 = vpop.f32.mrb[0].mxu0
    %v392 = vadd.f32 %v324, %v391
    %v393 = vpop.f32.mrb[0].mxu0
    %394 = vdwg.mxu0
    %vm395 = vcmask 23552
    %v396 = vsel %vm395, %v392, -inf
    %397 = vmax.xlane.f32.xlu0 %v396
    %v398 = vpop.xlane.xlu0 %397
    %v399 = vsub.f32 %v392, %v398
    %v400 = vmul.f32 %v399, 1.442695
    %v401 = vpow.pop %v400
    %v402 = vsel %vm395, %v401, 0.0
    %403 = vadd.xlane.f32.xlu0 %v402
    %v404 = vpop.xlane.xlu0 %403
    %v405 = vlog2.pop %v404
    %v406 = vmul.f32 %v405, 0.6931472
    %v407 = vsub.f32 %v399, %v406
    %v408 = vmax.f32 %v392, 0.0
    %vm409 = vcmp.ne.f32.partialorder %v392, %v392
    %v410 = vadd.f32 %v392, 0.0
    %v411 = vand.u32 2147483647, %v392
    %v412 = vsub.f32 0.0, %v411
    %v413 = vmul.f32 %v412, 1.442695
    %v414 = vpow.pop %v413
    %v415 = vadd.f32 %v414, 1.0
    %v416 = vlog2.pop %v415
    %v417 = vmul.f32 %v416, 0.6931472
    %v418 = vmul.f32 -0.5, %v414
    %v419 = vadd.f32 %v418, 1.0
    %v420 = vmul.f32 %v419, %v414
    %v421 = vand.u32 2147483647, %v414
    %vm422 = vcmp.lt.f32.partialorder %v421, 0.0004427343
    %v423 = vsel %vm422, %v420, %v417
    %v424 = vadd.f32 %v408, %v423
    %v425 = vsel %vm409, %v410, %v424
    %v426 = vmul.f32 %v287, %v425
    %v427 = vsub.f32 0.0, %v426
    %v428 = vsel %vm395, %v407, %v427
    %vm429 = vcmask 48128
    %430 = vst.msk [vmem:[#allocation2] sm:$0xff] %vm429, %v428
    // Predicated region
    $region26: #{tpu_custom_call.1} parent=1 // pred_check
      _
    $region27: #{tpu_custom_call.1} parent=1 // pred_check_branch
      %432 = sbr.rel (0) target = $region29
    $region28: #{tpu_custom_call.1} parent=1 // pred_region
      %s434 = ssub.s32 128, 128
      %435 = vsyncadd [#allocation3], %s434
      %s437 = sshll.u32 [#allocation2], 4
      %s438 = int_to_ptr.vmem [resolvable:$true] %s437
      %440 = dma.vmem_to_hbm [thread:$0]  %s438, 128, %s6, [#allocation3]
    $region29: #{tpu_custom_call.1} parent=1 // pred_fallthru
      _
    // Predicated region
    $region30: #{tpu_custom_call.1} parent=1 // pred_check
      _
    $region31: #{tpu_custom_call.1} parent=1 // pred_check_branch
      %442 = sbr.rel (0) target = $region33
    $region32: #{tpu_custom_call.1} parent=1 // pred_region
      %443 = dma.done [#allocation3], 128
    $region33: #{tpu_custom_call.1} parent=1 // pred_fallthru
      _
    %444 = vsyncpa [#allocation3], 1

</llo_original>
